<compile_context>
chip_gen: v6e
topology: v6e:2x2x1
jax: 0.10.0
libtpu: 0.0.40
codegen_flags: <defaults>
</compile_context>

<pallas_src>
import jax
import jax.numpy as jnp
from jax.experimental import pallas as pl
from jax.experimental.pallas import tpu as pltpu

_LANES = 128
_DEFAULT_BLOCK_ROWS = 1024  # 1024 * 128 * 4B = 512 KiB per f32 block


def _sum_single_block_kernel(x_ref, o_ref):
    # x_ref: full (rows, 128) VMEM tile; o_ref: (1, 1) SMEM scalar.
    o_ref[0, 0] = jnp.sum(x_ref[...].astype(jnp.float32)).astype(o_ref.dtype)


def _sum_tiled_kernel(x_ref, o_ref, acc_ref):
    # x_ref: (block_rows, 128) VMEM tile; o_ref: (1, 1) SMEM; acc_ref: (1, 1) SMEM f32.
    @pl.when(pl.program_id(0) == 0)
    def _():
        acc_ref[0, 0] = jnp.float32(0.0)

    acc_ref[0, 0] += jnp.sum(x_ref[...].astype(jnp.float32))

    @pl.when(pl.program_id(0) == pl.num_programs(0) - 1)
    def _():
        o_ref[0, 0] = acc_ref[0, 0].astype(o_ref.dtype)


def uniform_loss(losses: jax.Array, *, block_rows: int = _DEFAULT_BLOCK_ROWS) -> jax.Array:
    """Sum all task losses (uniform multi-task loss). Returns a 0-d scalar."""
    assert losses.ndim == 1, "losses must be a 1-D vector of per-task losses"
    n = losses.shape[0]
    out_dtype = losses.dtype
    block_elems = block_rows * _LANES

    if n <= block_elems:
        # Single-block, gridless path (typical: num_task is tiny).
        rows = max(pl.cdiv(n, _LANES), 1)
        padded = rows * _LANES
        x = jnp.pad(losses, (0, padded - n)) if padded != n else losses
        x = x.reshape(rows, _LANES)
        out = pl.pallas_call(
            _sum_single_block_kernel,
            out_shape=jax.ShapeDtypeStruct((1, 1), out_dtype),
            in_specs=[pl.BlockSpec(memory_space=pltpu.MemorySpace.VMEM)],
            out_specs=pl.BlockSpec(memory_space=pltpu.MemorySpace.SMEM),
        )(x)
        return out[0, 0]

    # Grid-tiled reduction path for large num_task.
    n_blocks = pl.cdiv(n, block_elems)
    padded = n_blocks * block_elems
    x = jnp.pad(losses, (0, padded - n)) if padded != n else losses
    x = x.reshape(n_blocks * block_rows, _LANES)
    out = pl.pallas_call(
        _sum_tiled_kernel,
        out_shape=jax.ShapeDtypeStruct((1, 1), out_dtype),
        grid=(n_blocks,),
        in_specs=[pl.BlockSpec((block_rows, _LANES), lambda i: (i, 0))],
        out_specs=pl.BlockSpec(memory_space=pltpu.MemorySpace.SMEM),
        scratch_shapes=[pltpu.SMEM((1, 1), jnp.float32)],
        compiler_params=pltpu.CompilerParams(dimension_semantics=("arbitrary",)),
    )(x)
    return out[0, 0]


if __name__ == "__main__":
    key = jax.random.PRNGKey(0)

    # Small case consistent with the module: a vector of per-task losses.
    num_task = 8
    losses = jax.random.uniform(key, (num_task,), dtype=jnp.float32)
    result = uniform_loss(losses)
    jax.block_until_ready(result)
    ref = jnp.sum(losses)
    assert jnp.allclose(result, ref, rtol=1e-6, atol=1e-6), (result, ref)

    # Also exercise the grid-tiled path (still small) with a tiny block size:
    # 2000 elems, block = (8, 128) -> 2 grid steps, zero-padded to 2048.
    n_big = 2000
    losses_big = jax.random.normal(jax.random.PRNGKey(0), (n_big,), dtype=jnp.float32)
    result_big = uniform_loss(losses_big, block_rows=8)
    jax.block_until_ready(result_big)
    ref_big = jnp.sum(losses_big)
    assert jnp.allclose(result_big, ref_big, rtol=1e-4, atol=5e-3), (result_big, ref_big)

    print("KERNEL_OK")
</pallas_src>

<mosaic_0001>
module attributes {stable_mosaic.version = 11 : i64} {
  func.func @_sum_single_block_kernel(%arg0: memref<1x128xf32, #tpu.memory_space<vmem>>, %arg1: memref<1x1xf32, #tpu.memory_space<smem>>) attributes {dimension_semantics = [], scalar_prefetch = 0 : i64, scratch_operands = 0 : i64, tpu.core_type = #tpu.core_type<tc>} {
    %c0 = arith.constant 0 : index
    %c0_0 = arith.constant 0 : index
    %0 = vector.load %arg0[%c0, %c0_0] : memref<1x128xf32, #tpu.memory_space<vmem>>, vector<1x128xf32>
    %1 = vector.shape_cast %0 : vector<1x128xf32> to vector<1x1x128xf32>
    %cst = arith.constant dense<0.000000e+00> : vector<1xf32>
    %2 = vector.multi_reduction <add>, %1, %cst [1, 2] : vector<1x1x128xf32> to vector<1xf32>
    %3 = vector.shape_cast %2 : vector<1xf32> to vector<1x1x1xf32>
    %4 = vector.extract %3[0, 0, 0] : f32 from vector<1x1x1xf32>
    %c0_1 = arith.constant 0 : index
    %c0_2 = arith.constant 0 : index
    %5 = memref.load %arg1[%c0_1, %c0_2] : memref<1x1xf32, #tpu.memory_space<smem>>
    memref.store %4, %arg1[%c0_1, %c0_2] : memref<1x1xf32, #tpu.memory_space<smem>>
    return
  }
}

</mosaic_0001>

<llo_original>
// kernel: tpu_custom_call.1
$region0: #{tpu_custom_call.1}
  #allocation0 [shape = 'u32[]', space=smem, size = 0x4, offset = 0x4, fixed_abs, tag = 'smem constant byte address 0x4 - core index']
  #allocation1 [shape = 'u32[144,128]{1,0:T(1,128)}', space=vmem, size = 0x12000, scoped, tag = 'internal scratch']
  %s0 = inlined_call_operand.hbm [shape: f32[1,128], index: 0, kind: input, shape index: {}]
  %s1 = inlined_call_operand.hbm [shape: f32[1,1], index: 1, kind: output, shape index: {}]
  %s2 = sld [smem:[#allocation0]]
  $region18: #{tpu_custom_call.1} parent=0
    _
  %s4 = ssub.s32 1, %s2
  %s5 = scalar_select 0, %s4, %s2
  $region1: #{tpu_custom_call.1} parent=0
    #allocation2 [shape = 'u8[512]{0}', space=vmem, size = 0x400, scoped, tag = 'input window, operand 0, single buffered']
    #allocation3 [shape = 's32[1]{0}', space=sflag, size = 0x4, scoped, tag = 'scoped memory for tpu_custom_call.1']
    #allocation4 [shape = 's32[1]{0}', space=sflag, size = 0x4, scoped, tag = 'scoped memory for tpu_custom_call.1']
    #allocation5 [shape = 'u8[512]{0}', space=smem, size = 0x200, scoped, tag = 'output window, operand 0, single buffered']
    %6 = vsyncpa [#allocation3], 0
    %7 = vsyncpa [#allocation4], 0
    // Predicated region
    $region2: #{tpu_custom_call.1} parent=1 // pred_check
      _
    $region3: #{tpu_custom_call.1} parent=1 // pred_check_branch
      %9 = sbr.rel (0) target = $region5
    $region4: #{tpu_custom_call.1} parent=1 // pred_region
      %s11 = ssub.s32 16, 16
      %12 = vsyncadd [#allocation3], %s11
      %s14 = sshll.u32 [#allocation2], 4
      %s15 = int_to_ptr.vmem [resolvable:$true] %s14
      %17 = dma.hbm_to_vmem [thread:$0]  %s0, 16, %s15, [#allocation3]
    $region5: #{tpu_custom_call.1} parent=1 // pred_fallthru
      _
    // Predicated region
    $region6: #{tpu_custom_call.1} parent=1 // pred_check
      _
    $region7: #{tpu_custom_call.1} parent=1 // pred_check_branch
      %19 = sbr.rel (0) target = $region9
    $region8: #{tpu_custom_call.1} parent=1 // pred_region
      %20 = dma.done [#allocation3], 16
    $region9: #{tpu_custom_call.1} parent=1 // pred_fallthru
      _
    %v21 = vld [vmem:[#allocation2] sm:$0x1]
    %vm22 = vcmask 1040384
    %v23 = vsel %vm22, %v21, 0.0
    %24 = vadd.xlane.f32.xlu0 %v23
    %v25 = vpop.xlane.xlu0 %24
    %v26 = vrot.slane %v25, 4
    %v27 = vadd.f32 %v25, %v26
    %v28 = vrot.slane %v27, 2
    %v29 = vadd.f32 %v27, %v28
    %v30 = vrot.slane %v29, 1
    %v31 = vadd.f32 %v29, %v30
    %s32 = vtos %v31
    %s33 = scalar_lea.smem [#allocation5], 0
    %34 = sst [smem:[%s33]] %s32
    // Predicated region
    $region10: #{tpu_custom_call.1} parent=1 // pred_check
      _
    $region11: #{tpu_custom_call.1} parent=1 // pred_check_branch
      %36 = sbr.rel (0) target = $region13
    $region12: #{tpu_custom_call.1} parent=1 // pred_region
      %s38 = ssub.s32 16, 16
      %39 = vsyncadd [#allocation4], %s38
      %42 = dma.smem_to_hbm [#allocation5], 16, %s1, [#allocation4]
    $region13: #{tpu_custom_call.1} parent=1 // pred_fallthru
      _
    // Predicated region
    $region14: #{tpu_custom_call.1} parent=1 // pred_check
      _
    $region15: #{tpu_custom_call.1} parent=1 // pred_check_branch
      %44 = sbr.rel (0) target = $region17
    $region16: #{tpu_custom_call.1} parent=1 // pred_region
      %45 = dma.done [#allocation4], 16
    $region17: #{tpu_custom_call.1} parent=1 // pred_fallthru
      _
    %46 = sfence
    %47 = vsyncpa [#allocation3], 1
    %48 = vsyncpa [#allocation4], 1

</llo_original>
